<compile_context>
chip_gen: v7x
topology: tpu7x:2x2x1
jax: 0.10.0
libtpu: 0.0.40
codegen_flags: <defaults>
</compile_context>

<pallas_src>
import math

import jax
import jax.numpy as jnp
from jax.experimental import pallas as pl
from jax.experimental.pallas import tpu as pltpu

C_IN = 4
PATCH = 16
D_MODEL = 32
LOOKBACK = 11
N_MIN, N_HOUR = 60, 24
N_TIME = N_MIN + N_HOUR          # 84
EPS = 1e-5                       # nn.LayerNorm default eps

# ---- packed-parameter row layout (every section start is a multiple of 8) ----
_PC = PATCH * C_IN                         # 64
_ROW_TOK = 0                               # (PC, d)  token Linear weight^T
_ROW_TIME = _ROW_TOK + _PC                 # (84, d)  [minute_tab; hour_tab] (padded to 88 rows)
_ROW_GATE = _ROW_TIME + 88                 # (d, d)   gate Linear weight^T
_ROW_VEC = _ROW_GATE + D_MODEL             # (8, d)   packed (1,d) parameter vectors
_ROW_POS = _ROW_VEC + 8                    # (B*T, d) positional encoding tiled over batch
_B_TOK, _G_TOK, _BE_TOK, _W_VOL, _B_VOL, _G_VOL, _BE_VOL, _B_GATE = range(8)


def _ln(h, g, b):
    mu = jnp.mean(h, axis=-1, keepdims=True)
    var = jnp.mean((h - mu) ** 2, axis=-1, keepdims=True)
    return (h - mu) * jax.lax.rsqrt(var + EPS) * g + b


def _lift_rows(a):
    """(B, d) -> (B, 1, d) using only static slices + leading-axis concat."""
    return jnp.concatenate([a[b:b + 1][None] for b in range(a.shape[0])], axis=0)


# --------------------------------------------------------------------------
# Single fused kernel (whole batch, no grid).
# --------------------------------------------------------------------------
def fused_embed_kernel(acts_ref, marks_ref, wpack_ref, out_ref):
    B, BT, d = out_ref.shape
    T = BT // B
    PC = acts_ref.shape[1]
    close_row = acts_ref.shape[0] - B          # 8-aligned by construction

    # ---- packed parameters: static slices of one VMEM tile ----
    w_tok = wpack_ref[_ROW_TOK:_ROW_TOK + PC, :]              # (PC, d)
    timetab = wpack_ref[_ROW_TIME:_ROW_TIME + N_TIME, :]      # (84, d)
    w_gate = wpack_ref[_ROW_GATE:_ROW_GATE + d, :]            # (d, d)
    pv = wpack_ref[_ROW_VEC:_ROW_VEC + 8, :]                  # (8, d)
    pos = wpack_ref[_ROW_POS:_ROW_POS + BT, :]                # (BT, d)
    b_tok, g_tok, be_tok = pv[_B_TOK:_B_TOK + 1], pv[_G_TOK:_G_TOK + 1], pv[_BE_TOK:_BE_TOK + 1]
    w_vol, b_vol = pv[_W_VOL:_W_VOL + 1], pv[_B_VOL:_B_VOL + 1]
    g_vol, be_vol = pv[_G_VOL:_G_VOL + 1], pv[_BE_VOL:_BE_VOL + 1]
    b_gate = pv[_B_GATE:_B_GATE + 1]

    # ---- token embedding: Linear(PC -> d) + LayerNorm (whole batch) ----
    featx = acts_ref[0:BT, :]                                 # (BT, PC)
    tok = _ln(jnp.dot(featx, w_tok, preferred_element_type=jnp.float32) + b_tok,
              g_tok, be_tok)                                  # (BT, d)

    # ---- time embedding: in-kernel one-hot (iota compare) + one MXU dot ----
    marks = marks_ref[...]                                    # (BT, 2) int32
    lane = jax.lax.broadcasted_iota(jnp.int32, (BT, N_TIME), 1)
    onehot = jnp.logical_or(lane == marks[:, 0:1],
                            lane == marks[:, 1:2] + N_MIN).astype(jnp.float32)
    time_e = jnp.dot(onehot, timetab, preferred_element_type=jnp.float32)  # (BT, d)

    sum_part = tok + time_e + pos                             # (BT, d)

    # ---- volatility branch (whole batch) ----
    close = acts_ref[close_row:close_row + B, 0:T]            # (B, T)
    diffs = jnp.abs(close[:, 1:] - close[:, :T - 1])          # (B, T-1)
    # Unbiased std over [0, |d1|, ..., |d_{T-1}|]; the leading zero return is
    # folded in algebraically (matches torch.std, correction=1).
    mean = jnp.sum(diffs, axis=1, keepdims=True) / T          # (B, 1)
    var = (jnp.sum((diffs - mean) ** 2, axis=1, keepdims=True)
           + mean * mean) / (T - 1)
    std = jnp.sqrt(var)                                       # (B, 1)

    vol = _ln(std * w_vol + b_vol, g_vol, be_vol)             # (B, d)  Linear(1,d)+LN
    gate = jax.nn.sigmoid(
        jnp.dot(vol, w_gate, preferred_element_type=jnp.float32) + b_gate)  # (B, d)

    # ---- combine: out[b1, b2*T + t, :] = sum_part[b2*T+t] * gate[b1] + vol[b1]
    # Single broadcasted store (one store region, broadcasts emitted once).
    out_ref[...] = sum_part[None] * _lift_rows(gate) + _lift_rows(vol)


# --------------------------------------------------------------------------
# Init-time parameter packing (runs ONCE, outside the per-call path)
# --------------------------------------------------------------------------
def positional_encoding(T, d):
    pos = jnp.arange(T, dtype=jnp.float32)[:, None]
    div = jnp.exp(jnp.arange(0, d, 2, dtype=jnp.float32) *
                  (-math.log(10000.0) / d))
    pe = jnp.zeros((T, d), jnp.float32)
    pe = pe.at[:, 0::2].set(jnp.sin(pos * div))
    pe = pe.at[:, 1::2].set(jnp.cos(pos * div))
    return pe


def pack_parameters(params, batch_size, seq_len):
    """Pack every parameter (plus the batch-tiled positional encoding) into
    one (214, d_model) f32 array.  Section starts are multiples of 8 rows so
    all in-kernel static slices are sublane-aligned."""
    d = D_MODEL
    pos_bt = jnp.tile(positional_encoding(seq_len, d), (batch_size, 1))     # (B*T, d)
    time_tab = jnp.concatenate([params["min_tab"], params["hour_tab"]], axis=0)
    time_tab = jnp.pad(time_tab, ((0, 88 - N_TIME), (0, 0)))                # 84 -> 88 rows
    pvec = jnp.concatenate(
        [params["b_tok"], params["g_tok"], params["be_tok"],
         params["w_vol"], params["b_vol"], params["g_vol"],
         params["be_vol"], params["b_gate"]], axis=0)                        # (8, d)
    packed = jnp.concatenate(
        [params["w_tok_t"], time_tab, params["w_gate_t"], pvec, pos_bt],
        axis=0).astype(jnp.float32)
    assert packed.shape == (_ROW_POS + batch_size * seq_len, d), packed.shape
    return packed


def _select_time_marks(x_mark, T):
    patch_idx = jnp.linspace(0, x_mark.shape[1] - 1, T).astype(jnp.int32)
    xm = x_mark[:, patch_idx, :]
    if xm.shape[1] > 35:  # CryptoTimeEmbedding subsample (never fires, T <= 35)
        sub = jnp.linspace(0, xm.shape[1] - 1, 35).astype(jnp.int32)
        xm = xm[:, sub, :]
    return xm


# --------------------------------------------------------------------------
# Per-call forward (jitted)
# --------------------------------------------------------------------------
def crypto_data_embedding(x, x_mark, wpack):
    B, T, PC = x.shape
    d = D_MODEL
    assert T == LOOKBACK, "torch reference only broadcasts when T == lookback"
    BT = B * T

    # time-mark subselection (the torch patch_indices linspace gather)
    xm = _select_time_marks(x_mark, T)                        # (B, T, 2)
    marks = xm.reshape(BT, 2).astype(jnp.int32)

    # activations: token features + close rows (zero-padded, 8-aligned start)
    pad_rows = (-BT) % 8
    feat_x = x.reshape(BT, PC)                                # free reshape
    close_pad = jnp.pad(x[:, :, -1], ((0, 0), (0, PC - T)))   # (B, PC)
    acts = jnp.concatenate(
        [feat_x, jnp.zeros((pad_rows, PC), feat_x.dtype), close_pad], axis=0)

    flops = 2 * BT * (PC + N_TIME) * d + 2 * B * d * d + 12 * BT * d
    bytes_accessed = 4 * (acts.size + marks.size + wpack.size + B * BT * d)
    cost = pl.CostEstimate(flops=flops,
                           transcendentals=BT + 3 * B + B * d,
                           bytes_accessed=bytes_accessed)

    vmem = pl.BlockSpec(memory_space=pltpu.MemorySpace.VMEM)
    out = pl.pallas_call(
        fused_embed_kernel,
        out_shape=jax.ShapeDtypeStruct((B, BT, d), jnp.float32),
        in_specs=[vmem, vmem, vmem],
        out_specs=vmem,
        cost_estimate=cost,
    )(acts, marks, wpack)

    # Dropout(p=0.1) -> identity (eval mode).
    return out.reshape(B, B, T, d)


# --------------------------------------------------------------------------
# Pure-JAX reference (mirrors the PyTorch code path exactly)
# --------------------------------------------------------------------------
def reference_forward(x, x_mark, params):
    B, T, _ = x.shape
    d, L = D_MODEL, LOOKBACK

    tok = _ln(jnp.dot(x, params["w_tok_t"]) + params["b_tok"][0],
              params["g_tok"][0], params["be_tok"][0])

    xc = x[:, :, -1:]
    diffs = jnp.abs(xc[:, 1:] - xc[:, :-1])
    returns = jnp.pad(diffs, ((0, 0), (1, 0), (0, 0)))
    nw = T - L + 1
    windows = jnp.stack([returns[:, i:i + L, 0] for i in range(nw)], axis=1)
    std = jnp.std(windows, axis=-1, ddof=1)[..., None, None]   # (B, nw, 1, 1)
    pad = (L - 1) // 2
    volat = jnp.pad(std, ((0, 0), (0, 0), (pad, pad), (0, 0)), mode="edge")
    vol_e = _ln(volat * params["w_vol"][0] + params["b_vol"][0],
                params["g_vol"][0], params["be_vol"][0])        # (B, nw, L, d)

    xm = _select_time_marks(x_mark, T)
    time_e = params["min_tab"][xm[..., 0]] + params["hour_tab"][xm[..., 1]]
    pos = positional_encoding(T, d)[None]
    gate = jax.nn.sigmoid(jnp.dot(vol_e, params["w_gate_t"]) + params["b_gate"][0])
    return (tok + time_e + pos) * gate + vol_e                  # (B, B, T, d)


if __name__ == "__main__":
    key = jax.random.PRNGKey(0)
    ks = jax.random.split(key, 16)
    B, T = 2, LOOKBACK
    PC = PATCH * C_IN
    d = D_MODEL
    T_mark = 24

    params = {
        "w_tok_t": jax.random.normal(ks[0], (PC, d), jnp.float32) * 0.08,
        "b_tok":   jax.random.normal(ks[1], (1, d), jnp.float32) * 0.05,
        "g_tok":   1.0 + jax.random.normal(ks[2], (1, d), jnp.float32) * 0.05,
        "be_tok":  jax.random.normal(ks[3], (1, d), jnp.float32) * 0.05,
        "min_tab": jax.random.normal(ks[4], (N_MIN, d), jnp.float32) * 0.1,
        "hour_tab": jax.random.normal(ks[5], (N_HOUR, d), jnp.float32) * 0.1,
        "w_vol":   jax.random.normal(ks[6], (1, d), jnp.float32) * 0.5,
        "b_vol":   jax.random.normal(ks[7], (1, d), jnp.float32) * 0.05,
        "g_vol":   1.0 + jax.random.normal(ks[8], (1, d), jnp.float32) * 0.05,
        "be_vol":  jax.random.normal(ks[9], (1, d), jnp.float32) * 0.05,
        "w_gate_t": jax.random.normal(ks[10], (d, d), jnp.float32) * 0.1,
        "b_gate":  jax.random.normal(ks[11], (1, d), jnp.float32) * 0.05,
    }

    # Packed parameter array: built ONCE here (init time), not per call.
    wpack = jax.block_until_ready(pack_parameters(params, B, T))

    x = jax.random.normal(ks[12], (B, T, PC), jnp.float32)
    minutes = jax.random.randint(ks[13], (B, T_mark), 0, N_MIN)
    hours = jax.random.randint(ks[14], (B, T_mark), 0, N_HOUR)
    x_mark = jnp.stack([minutes, hours], axis=-1)

    fwd = jax.jit(crypto_data_embedding)
    out = jax.block_until_ready(fwd(x, x_mark, wpack))
    ref = jax.block_until_ready(reference_forward(x, x_mark, params))

    assert out.shape == (B, B, T, d), out.shape
    err = float(jnp.max(jnp.abs(out - ref)))
    assert jnp.allclose(out, ref, atol=1e-4, rtol=1e-4), err
    print("KERNEL_OK")
</pallas_src>

<mosaic_0001>
module attributes {stable_mosaic.version = 11 : i64} {
  func.func @fused_embed_kernel(%arg0: memref<26x64xf32, #tpu.memory_space<vmem>>, %arg1: memref<22x2xi32, #tpu.memory_space<vmem>>, %arg2: memref<214x32xf32, #tpu.memory_space<vmem>>, %arg3: memref<2x22x32xf32, #tpu.memory_space<vmem>>) attributes {dimension_semantics = [], scalar_prefetch = 0 : i64, scratch_operands = 0 : i64, tpu.core_type = #tpu.core_type<tc>} {
    %c0 = arith.constant 0 : index
    %c0_0 = arith.constant 0 : index
    %0 = vector.load %arg2[%c0, %c0_0] : memref<214x32xf32, #tpu.memory_space<vmem>>, vector<64x32xf32>
    %c64 = arith.constant 64 : index
    %c0_1 = arith.constant 0 : index
    %1 = vector.load %arg2[%c64, %c0_1] : memref<214x32xf32, #tpu.memory_space<vmem>>, vector<84x32xf32>
    %c152 = arith.constant 152 : index
    %c0_2 = arith.constant 0 : index
    %2 = vector.load %arg2[%c152, %c0_2] : memref<214x32xf32, #tpu.memory_space<vmem>>, vector<32x32xf32>
    %c184 = arith.constant 184 : index
    %c0_3 = arith.constant 0 : index
    %3 = vector.load %arg2[%c184, %c0_3] : memref<214x32xf32, #tpu.memory_space<vmem>>, vector<8x32xf32>
    %c192 = arith.constant 192 : index
    %c0_4 = arith.constant 0 : index
    %4 = vector.load %arg2[%c192, %c0_4] : memref<214x32xf32, #tpu.memory_space<vmem>>, vector<22x32xf32>
    %5 = vector.extract_strided_slice %3 {offsets = [0, 0], sizes = [1, 32], strides = [1, 1]} : vector<8x32xf32> to vector<1x32xf32>
    %6 = vector.extract_strided_slice %3 {offsets = [1, 0], sizes = [1, 32], strides = [1, 1]} : vector<8x32xf32> to vector<1x32xf32>
    %7 = vector.extract_strided_slice %3 {offsets = [2, 0], sizes = [1, 32], strides = [1, 1]} : vector<8x32xf32> to vector<1x32xf32>
    %8 = vector.extract_strided_slice %3 {offsets = [3, 0], sizes = [1, 32], strides = [1, 1]} : vector<8x32xf32> to vector<1x32xf32>
    %9 = vector.extract_strided_slice %3 {offsets = [4, 0], sizes = [1, 32], strides = [1, 1]} : vector<8x32xf32> to vector<1x32xf32>
    %10 = vector.extract_strided_slice %3 {offsets = [5, 0], sizes = [1, 32], strides = [1, 1]} : vector<8x32xf32> to vector<1x32xf32>
    %11 = vector.extract_strided_slice %3 {offsets = [6, 0], sizes = [1, 32], strides = [1, 1]} : vector<8x32xf32> to vector<1x32xf32>
    %12 = vector.extract_strided_slice %3 {offsets = [7, 0], sizes = [1, 32], strides = [1, 1]} : vector<8x32xf32> to vector<1x32xf32>
    %c0_5 = arith.constant 0 : index
    %c0_6 = arith.constant 0 : index
    %13 = vector.load %arg0[%c0_5, %c0_6] : memref<26x64xf32, #tpu.memory_space<vmem>>, vector<22x64xf32>
    %cst = arith.constant dense<0.000000e+00> : vector<22x32xf32>
    %14 = tpu.matmul %13, %0, %cst {dimension_numbers = #tpu.dot_dimension_numbers<[1], [0], [0], [1], [0, 0, 1, 1], [], []>} : vector<22x64xf32>, vector<64x32xf32>, vector<22x32xf32> -> vector<22x32xf32>
    %15 = vector.broadcast %5 : vector<1x32xf32> to vector<22x32xf32>
    %16 = arith.addf %14, %15 : vector<22x32xf32>
    %cst_7 = arith.constant dense<0.000000e+00> : vector<22xf32>
    %17 = vector.multi_reduction <add>, %16, %cst_7 [1] : vector<22x32xf32> to vector<22xf32>
    %18 = vector.shape_cast %17 : vector<22xf32> to vector<22x1xf32>
    %cst_8 = arith.constant 3.200000e+01 : f32
    %19 = vector.broadcast %cst_8 : f32 to vector<22x1xf32>
    %20 = arith.divf %18, %19 : vector<22x1xf32>
    %21 = vector.broadcast %20 : vector<22x1xf32> to vector<22x32xf32>
    %22 = arith.subf %16, %21 : vector<22x32xf32>
    %23 = arith.mulf %22, %22 : vector<22x32xf32>
    %cst_9 = arith.constant dense<0.000000e+00> : vector<22xf32>
    %24 = vector.multi_reduction <add>, %23, %cst_9 [1] : vector<22x32xf32> to vector<22xf32>
    %25 = vector.shape_cast %24 : vector<22xf32> to vector<22x1xf32>
    %cst_10 = arith.constant 3.200000e+01 : f32
    %26 = vector.broadcast %cst_10 : f32 to vector<22x1xf32>
    %27 = arith.divf %25, %26 : vector<22x1xf32>
    %28 = vector.broadcast %20 : vector<22x1xf32> to vector<22x32xf32>
    %29 = arith.subf %16, %28 : vector<22x32xf32>
    %cst_11 = arith.constant 9.99999974E-6 : f32
    %30 = vector.broadcast %cst_11 : f32 to vector<22x1xf32>
    %31 = arith.addf %27, %30 : vector<22x1xf32>
    %32 = math.rsqrt %31 : vector<22x1xf32>
    %33 = vector.broadcast %32 : vector<22x1xf32> to vector<22x32xf32>
    %34 = arith.mulf %29, %33 : vector<22x32xf32>
    %35 = vector.broadcast %6 : vector<1x32xf32> to vector<22x32xf32>
    %36 = arith.mulf %34, %35 : vector<22x32xf32>
    %37 = vector.broadcast %7 : vector<1x32xf32> to vector<22x32xf32>
    %38 = arith.addf %36, %37 : vector<22x32xf32>
    %c0_12 = arith.constant 0 : index
    %c0_13 = arith.constant 0 : index
    %39 = vector.load %arg1[%c0_12, %c0_13] : memref<22x2xi32, #tpu.memory_space<vmem>>, vector<22x2xi32>
    %40 = tpu.iota {dimensions = array<i32: 1>} : vector<22x84xi32>
    %41 = vector.extract_strided_slice %39 {offsets = [0, 0], sizes = [22, 1], strides = [1, 1]} : vector<22x2xi32> to vector<22x1xi32>
    %42 = vector.broadcast %41 : vector<22x1xi32> to vector<22x84xi32>
    %43 = arith.cmpi eq, %40, %42 : vector<22x84xi32>
    %44 = vector.extract_strided_slice %39 {offsets = [0, 1], sizes = [22, 1], strides = [1, 1]} : vector<22x2xi32> to vector<22x1xi32>
    %c60_i32 = arith.constant 60 : i32
    %45 = vector.broadcast %c60_i32 : i32 to vector<22x1xi32>
    %46 = arith.addi %44, %45 : vector<22x1xi32>
    %47 = vector.broadcast %46 : vector<22x1xi32> to vector<22x84xi32>
    %48 = arith.cmpi eq, %40, %47 : vector<22x84xi32>
    %49 = arith.ori %43, %48 : vector<22x84xi1>
    %50 = arith.extui %49 : vector<22x84xi1> to vector<22x84xi32>
    %51 = arith.sitofp %50 : vector<22x84xi32> to vector<22x84xf32>
    %cst_14 = arith.constant dense<0.000000e+00> : vector<22x32xf32>
    %52 = tpu.matmul %51, %1, %cst_14 {dimension_numbers = #tpu.dot_dimension_numbers<[1], [0], [0], [1], [0, 0, 1, 1], [], []>} : vector<22x84xf32>, vector<84x32xf32>, vector<22x32xf32> -> vector<22x32xf32>
    %53 = arith.addf %38, %52 : vector<22x32xf32>
    %54 = arith.addf %53, %4 : vector<22x32xf32>
    %c24 = arith.constant 24 : index
    %c0_15 = arith.constant 0 : index
    %55 = vector.load %arg0[%c24, %c0_15] : memref<26x64xf32, #tpu.memory_space<vmem>>, vector<2x11xf32>
    %56 = vector.extract_strided_slice %55 {offsets = [0, 1], sizes = [2, 10], strides = [1, 1]} : vector<2x11xf32> to vector<2x10xf32>
    %57 = vector.extract_strided_slice %55 {offsets = [0, 0], sizes = [2, 10], strides = [1, 1]} : vector<2x11xf32> to vector<2x10xf32>
    %58 = arith.subf %56, %57 : vector<2x10xf32>
    %59 = math.absf %58 : vector<2x10xf32>
    %cst_16 = arith.constant dense<0.000000e+00> : vector<2xf32>
    %60 = vector.multi_reduction <add>, %59, %cst_16 [1] : vector<2x10xf32> to vector<2xf32>
    %61 = vector.shape_cast %60 : vector<2xf32> to vector<2x1xf32>
    %cst_17 = arith.constant 1.100000e+01 : f32
    %62 = vector.broadcast %cst_17 : f32 to vector<2x1xf32>
    %63 = arith.divf %61, %62 : vector<2x1xf32>
    %64 = vector.broadcast %63 : vector<2x1xf32> to vector<2x10xf32>
    %65 = arith.subf %59, %64 : vector<2x10xf32>
    %66 = arith.mulf %65, %65 : vector<2x10xf32>
    %cst_18 = arith.constant dense<0.000000e+00> : vector<2xf32>
    %67 = vector.multi_reduction <add>, %66, %cst_18 [1] : vector<2x10xf32> to vector<2xf32>
    %68 = vector.shape_cast %67 : vector<2xf32> to vector<2x1xf32>
    %69 = arith.mulf %63, %63 : vector<2x1xf32>
    %70 = arith.addf %68, %69 : vector<2x1xf32>
    %cst_19 = arith.constant 1.000000e+01 : f32
    %71 = vector.broadcast %cst_19 : f32 to vector<2x1xf32>
    %72 = arith.divf %70, %71 : vector<2x1xf32>
    %73 = math.sqrt %72 : vector<2x1xf32>
    %74 = vector.broadcast %73 : vector<2x1xf32> to vector<2x32xf32>
    %75 = vector.broadcast %8 : vector<1x32xf32> to vector<2x32xf32>
    %76 = arith.mulf %74, %75 : vector<2x32xf32>
    %77 = vector.broadcast %9 : vector<1x32xf32> to vector<2x32xf32>
    %78 = arith.addf %76, %77 : vector<2x32xf32>
    %cst_20 = arith.constant dense<0.000000e+00> : vector<2xf32>
    %79 = vector.multi_reduction <add>, %78, %cst_20 [1] : vector<2x32xf32> to vector<2xf32>
    %80 = vector.shape_cast %79 : vector<2xf32> to vector<2x1xf32>
    %cst_21 = arith.constant 3.200000e+01 : f32
    %81 = vector.broadcast %cst_21 : f32 to vector<2x1xf32>
    %82 = arith.divf %80, %81 : vector<2x1xf32>
    %83 = vector.broadcast %82 : vector<2x1xf32> to vector<2x32xf32>
    %84 = arith.subf %78, %83 : vector<2x32xf32>
    %85 = arith.mulf %84, %84 : vector<2x32xf32>
    %cst_22 = arith.constant dense<0.000000e+00> : vector<2xf32>
    %86 = vector.multi_reduction <add>, %85, %cst_22 [1] : vector<2x32xf32> to vector<2xf32>
    %87 = vector.shape_cast %86 : vector<2xf32> to vector<2x1xf32>
    %cst_23 = arith.constant 3.200000e+01 : f32
    %88 = vector.broadcast %cst_23 : f32 to vector<2x1xf32>
    %89 = arith.divf %87, %88 : vector<2x1xf32>
    %90 = vector.broadcast %82 : vector<2x1xf32> to vector<2x32xf32>
    %91 = arith.subf %78, %90 : vector<2x32xf32>
    %cst_24 = arith.constant 9.99999974E-6 : f32
    %92 = vector.broadcast %cst_24 : f32 to vector<2x1xf32>
    %93 = arith.addf %89, %92 : vector<2x1xf32>
    %94 = math.rsqrt %93 : vector<2x1xf32>
    %95 = vector.broadcast %94 : vector<2x1xf32> to vector<2x32xf32>
    %96 = arith.mulf %91, %95 : vector<2x32xf32>
    %97 = vector.broadcast %10 : vector<1x32xf32> to vector<2x32xf32>
    %98 = arith.mulf %96, %97 : vector<2x32xf32>
    %99 = vector.broadcast %11 : vector<1x32xf32> to vector<2x32xf32>
    %100 = arith.addf %98, %99 : vector<2x32xf32>
    %cst_25 = arith.constant dense<0.000000e+00> : vector<2x32xf32>
    %101 = tpu.matmul %100, %2, %cst_25 {dimension_numbers = #tpu.dot_dimension_numbers<[1], [0], [0], [1], [0, 0, 1, 1], [], []>} : vector<2x32xf32>, vector<32x32xf32>, vector<2x32xf32> -> vector<2x32xf32>
    %102 = vector.broadcast %12 : vector<1x32xf32> to vector<2x32xf32>
    %103 = arith.addf %101, %102 : vector<2x32xf32>
    %104 = arith.negf %103 : vector<2x32xf32>
    %105 = math.exp %104 : vector<2x32xf32>
    %cst_26 = arith.constant 1.000000e+00 : f32
    %106 = vector.broadcast %cst_26 : f32 to vector<2x32xf32>
    %107 = arith.addf %106, %105 : vector<2x32xf32>
    %108 = arith.divf %106, %107 : vector<2x32xf32>
    %109 = vector.shape_cast %54 : vector<22x32xf32> to vector<1x22x32xf32>
    %110 = vector.extract_strided_slice %108 {offsets = [0, 0], sizes = [1, 32], strides = [1, 1]} : vector<2x32xf32> to vector<1x32xf32>
    %111 = vector.shape_cast %110 : vector<1x32xf32> to vector<1x1x32xf32>
    %112 = vector.extract_strided_slice %108 {offsets = [1, 0], sizes = [1, 32], strides = [1, 1]} : vector<2x32xf32> to vector<1x32xf32>
    %113 = vector.shape_cast %112 : vector<1x32xf32> to vector<1x1x32xf32>
    %114 = tpu.concatenate %111, %113 in 0 : vector<1x1x32xf32>, vector<1x1x32xf32> -> vector<2x1x32xf32>
    %115 = vector.broadcast %109 : vector<1x22x32xf32> to vector<2x22x32xf32>
    %116 = vector.broadcast %114 : vector<2x1x32xf32> to vector<2x22x32xf32>
    %117 = arith.mulf %115, %116 : vector<2x22x32xf32>
    %118 = vector.extract_strided_slice %100 {offsets = [0, 0], sizes = [1, 32], strides = [1, 1]} : vector<2x32xf32> to vector<1x32xf32>
    %119 = vector.shape_cast %118 : vector<1x32xf32> to vector<1x1x32xf32>
    %120 = vector.extract_strided_slice %100 {offsets = [1, 0], sizes = [1, 32], strides = [1, 1]} : vector<2x32xf32> to vector<1x32xf32>
    %121 = vector.shape_cast %120 : vector<1x32xf32> to vector<1x1x32xf32>
    %122 = tpu.concatenate %119, %121 in 0 : vector<1x1x32xf32>, vector<1x1x32xf32> -> vector<2x1x32xf32>
    %123 = vector.broadcast %122 : vector<2x1x32xf32> to vector<2x22x32xf32>
    %124 = arith.addf %117, %123 : vector<2x22x32xf32>
    %c0_27 = arith.constant 0 : index
    %c0_28 = arith.constant 0 : index
    %c0_29 = arith.constant 0 : index
    %125 = vector.load %arg3[%c0_27, %c0_28, %c0_29] : memref<2x22x32xf32, #tpu.memory_space<vmem>>, vector<2x22x32xf32>
    tpu.vector_store %arg3[%c0_27, %c0_28, %c0_29], %124 {strides = array<i32>} : memref<2x22x32xf32, #tpu.memory_space<vmem>>, vector<2x22x32xf32>,
    return
  }
}

</mosaic_0001>

<llo_original>
// kernel: crypto_data_embedding.1
$region0: #{crypto_data_embedding.1}
  #allocation0 [shape = 'u32[]', space=smem, size = 0x4, offset = 0x4, fixed_abs, tag = 'smem constant byte address 0x4 - core index']
  #allocation1 [shape = 'u32[144,128]{1,0:T(1,128)}', space=vmem, size = 0x12000, scoped, tag = 'internal scratch']
  %s0 = inlined_call_operand.vmem [shape: f32[26,64], index: 0, kind: input, shape index: {}]
  %s1 = inlined_call_operand.vmem [shape: s32[22,2], index: 1, kind: input, shape index: {}]
  %s2 = inlined_call_operand.vmem [shape: f32[214,32], index: 2, kind: input, shape index: {}]
  %s3 = inlined_call_operand.vmem [shape: f32[2,22,32], index: 3, kind: output, shape index: {}]
  %s4 = sld [smem:[#allocation0]]
  $region22: #{crypto_data_embedding.1} parent=0
    _
  %s6 = ssub.s32 1, %s4
  %s7 = scalar_select 0, %s6, %s4
  // Predicated region
  $region2: #{crypto_data_embedding.1} parent=0 // pred_check
    _
  $region3: #{crypto_data_embedding.1} parent=0 // pred_check_branch
    %9 = sbr.rel (0) target = $region5
  $region4: #{crypto_data_embedding.1} parent=0 // pred_region
    _
  $region5: #{crypto_data_embedding.1} parent=0 // pred_fallthru
    _
  // Predicated region
  $region6: #{crypto_data_embedding.1} parent=0 // pred_check
    _
  $region7: #{crypto_data_embedding.1} parent=0 // pred_check_branch
    %11 = sbr.rel (0) target = $region9
  $region8: #{crypto_data_embedding.1} parent=0 // pred_region
    _
  $region9: #{crypto_data_embedding.1} parent=0 // pred_fallthru
    _
  // Predicated region
  $region10: #{crypto_data_embedding.1} parent=0 // pred_check
    _
  $region11: #{crypto_data_embedding.1} parent=0 // pred_check_branch
    %13 = sbr.rel (0) target = $region13
  $region12: #{crypto_data_embedding.1} parent=0 // pred_region
    _
  $region13: #{crypto_data_embedding.1} parent=0 // pred_fallthru
    _
  %v14 = vld [vmem:[%s2] sm:$0xff]
  %v15 = vld [vmem:[%s2 + $0x8] sm:$0xff]
  %v16 = vld [vmem:[%s2 + $0x10] sm:$0xff]
  %v17 = vld [vmem:[%s2 + $0x18] sm:$0xff]
  %v18 = vld [vmem:[%s2 + $0x20] sm:$0xff]
  %v19 = vld [vmem:[%s2 + $0x28] sm:$0xff]
  %v20 = vld [vmem:[%s2 + $0x30] sm:$0xff]
  %v21 = vld [vmem:[%s2 + $0x38] sm:$0xff]
  %v22 = vld [vmem:[%s2 + $0x40] sm:$0xff]
  %v23 = vld [vmem:[%s2 + $0x48] sm:$0xff]
  %v24 = vld [vmem:[%s2 + $0x50] sm:$0xff]
  %v25 = vld [vmem:[%s2 + $0x58] sm:$0xff]
  %v26 = vld [vmem:[%s2 + $0x60] sm:$0xff]
  %v27 = vld [vmem:[%s2 + $0x68] sm:$0xff]
  %v28 = vld [vmem:[%s2 + $0x70] sm:$0xff]
  %v29 = vld [vmem:[%s2 + $0x78] sm:$0xff]
  %v30 = vld [vmem:[%s2 + $0x80] sm:$0xff]
  %v31 = vld [vmem:[%s2 + $0x88] sm:$0xff]
  %v32 = vld [vmem:[%s2 + $0x90] sm:$0xf]
  %v33 = vld [vmem:[%s2 + $0x98] sm:$0xff]
  %v34 = vld [vmem:[%s2 + $0xa0] sm:$0xff]
  %v35 = vld [vmem:[%s2 + $0xa8] sm:$0xff]
  %v36 = vld [vmem:[%s2 + $0xb0] sm:$0xff]
  %v37 = vld [vmem:[%s2 + $0xb8] sm:$0xff]
  %v38 = vld [vmem:[%s2 + $0xc0] sm:$0xff]
  %v39 = vld [vmem:[%s2 + $0xc8] sm:$0xff]
  %v40 = vld [vmem:[%s2 + $0xd0] sm:$0x3f]
  %v41 = vld [vmem:[%s0] sm:$0xff]
  %v42 = vld [vmem:[%s0 + $0x8] sm:$0xff]
  %v43 = vld [vmem:[%s0 + $0x10] sm:$0x3f]
  %v44 = vlaneseq
  %v45 = vshrl.u32 %v44, 7
  %v46 = vsub.s32 0, %v45
  %v47 = vrot.slane %v37, %v46
  %vm48 = vcmask 523264
  %v50 = vsel %vm48, %v41, 0
  %v53 = vsel %vm48, %v42, 0
  %v56 = vsel %vm48, %v43, 0
  %58 = vmatprep.subr.mxu0 0.0
  %59 = vmatpush1.msra.mxu0 %v14
  %60 = vmatprep.subr.mxu0 0.0
  %61 = vmatpush1.msra.mxu0 %v15
  %62 = vmatprep.subr.mxu0 0.0
  %63 = vmatpush1.msra.mxu0 %v16
  %64 = vmatprep.subr.mxu0 0.0
  %65 = vmatpush1.msra.mxu0 %v17
  %66 = vmatprep.subr.mxu0 0.0
  %67 = vmatpush1.msra.mxu0 %v18
  %68 = vmatprep.subr.mxu0 0.0
  %69 = vmatpush1.msra.mxu0 %v19
  %70 = vmatprep.subr.mxu0 0.0
  %71 = vmatpush1.msra.mxu0 %v20
  %72 = vmatprep.subr.mxu0 0.0
  %73 = vmatpush1.msra.mxu0 %v21
  %74 = vmatprep.subr.mxu0 0.0
  %75 = vmatpush1.msra.mxu0 0.0
  %76 = vmatprep.subr.mxu0 0.0
  %77 = vmatpush1.msra.mxu0 0.0
  %78 = vmatprep.subr.mxu0 0.0
  %79 = vmatpush1.msra.mxu0 0.0
  %80 = vmatprep.subr.mxu0 0.0
  %81 = vmatpush1.msra.mxu0 0.0
  %82 = vmatprep.subr.mxu0 0.0
  %83 = vmatpush1.msra.mxu0 0.0
  %84 = vmatprep.subr.mxu0 0.0
  %85 = vmatpush1.msra.mxu0 0.0
  %86 = vmatprep.subr.mxu0 0.0
  %87 = vmatpush1.msra.mxu0 0.0
  %88 = vmatprep.subr.mxu0 0.0
  %89 = vmatpush1.msra.mxu0 0.0
  %90 = vmatprep.subr.mxu0 0.0
  %91 = vmatpush1.msra.mxu0 0.0
  %92 = vmatprep.subr.mxu0 0.0
  %93 = vmatpush1.msra.mxu0 0.0
  %94 = vmatprep.subr.mxu0 0.0
  %95 = vmatpush1.msra.mxu0 0.0
  %96 = vmatprep.subr.mxu0 0.0
  %97 = vmatpush1.msra.mxu0 0.0
  %98 = vmatprep.subr.mxu0 0.0
  %99 = vmatpush1.msra.mxu0 0.0
  %100 = vmatprep.subr.mxu0 0.0
  %101 = vmatpush1.msra.mxu0 0.0
  %102 = vmatprep.subr.mxu0 0.0
  %103 = vmatpush1.msra.mxu0 0.0
  %104 = vmatprep.subr.mxu0 0.0
  %105 = vmatpush1.msra.mxu0 0.0
  %106 = vmatprep.subr.mxu0 0.0
  %107 = vmatpush1.msra.mxu0 0.0
  %108 = vmatprep.subr.mxu0 0.0
  %109 = vmatpush1.msra.mxu0 0.0
  %110 = vmatprep.subr.mxu0 0.0
  %111 = vmatpush1.msra.mxu0 0.0
  %112 = vmatprep.subr.mxu0 0.0
  %113 = vmatpush1.msra.mxu0 0.0
  %114 = vmatprep.subr.mxu0 0.0
  %115 = vmatpush1.msra.mxu0 0.0
  %116 = vmatprep.subr.mxu0 0.0
  %117 = vmatpush1.msra.mxu0 0.0
  %118 = vmatprep.subr.mxu0 0.0
  %119 = vmatpush1.msra.mxu0 0.0
  %120 = vmatprep.subr.mxu0 0.0
  %121 = vmatpush1.msra.mxu0 0.0
  %122 = vmatprep.mubr.f32.mxu0 0.0
  %123 = vmatmul.mubr.f32.gmra.mrb[0].mxu0 %v50
  %v124 = vpop.f32.mrb[0].mxu0
  %v125 = vadd.f32 %v47, %v124
  %v126 = vpop.f32.mrb[0].mxu0
  %127 = vmatprep.mubr.f32.mxu0 0.0
  %128 = vmatmul.mubr.f32.gmra.mrb[0].mxu0 %v53
  %v129 = vpop.f32.mrb[0].mxu0
  %v130 = vadd.f32 %v47, %v129
  %v131 = vpop.f32.mrb[0].mxu0
  %132 = vmatprep.mubr.f32.mxu0 0.0
  %133 = vmatmul.mubr.f32.gmra.mrb[0].mxu0 %v56
  %v134 = vpop.f32.mrb[0].mxu0
  %v135 = vadd.f32 %v47, %v134
  %v136 = vpop.f32.mrb[0].mxu0
  %137 = vdwg.mxu0
  %vm138 = vcmask 261120
  %v139 = vsel %vm138, %v125, 0.0
  %140 = vadd.xlane.f32.xlu0 %v139
  %v141 = vpop.xlane.xlu0 %140
  %v142 = vsel %vm138, %v130, 0.0
  %143 = vadd.xlane.f32.xlu0 %v142
  %v144 = vpop.xlane.xlu0 %143
  %vm145 = vcmask 259072
  %v146 = vsel %vm145, %v135, 0.0
  %147 = vadd.xlane.f32.xlu0 %v146
  %v148 = vpop.xlane.xlu0 %147
  %v149 = vrcp.pop 32.0
  %v150 = vmul.f32 %v141, %v149
  %v151 = vmul.f32 %v144, %v149
  %v152 = vmul.f32 %v148, %v149
  %v153 = vsub.f32 %v125, %v150
  %v154 = vsub.f32 %v130, %v151
  %v155 = vsub.f32 %v135, %v152
  %v156 = vmul.f32 %v153, %v153
  %v157 = vmul.f32 %v154, %v154
  %v158 = vmul.f32 %v155, %v155
  %v159 = vsel %vm138, %v156, 0.0
  %160 = vadd.xlane.f32.xlu0 %v159
  %v161 = vpop.xlane.xlu0 %160
  %v162 = vsel %vm138, %v157, 0.0
  %163 = vadd.xlane.f32.xlu0 %v162
  %v164 = vpop.xlane.xlu0 %163
  %v165 = vsel %vm145, %v158, 0.0
  %166 = vadd.xlane.f32.xlu0 %v165
  %v167 = vpop.xlane.xlu0 %166
  %v168 = vmul.f32 %v161, %v149
  %v169 = vmul.f32 %v164, %v149
  %v170 = vmul.f32 %v167, %v149
  %v171 = vadd.f32 %v168, 1e-05
  %v172 = vadd.f32 %v169, 1e-05
  %v173 = vadd.f32 %v170, 1e-05
  %v174 = vrsqrt.pop %v171
  %v175 = vrsqrt.pop %v172
  %v176 = vrsqrt.pop %v173
  %v177 = vmul.f32 %v153, %v174
  %v178 = vmul.f32 %v154, %v175
  %v179 = vmul.f32 %v155, %v176
  %v180 = vlaneseq
  %v181 = vshrl.u32 %v180, 7
  %v182 = vsub.s32 1, %v181
  %v183 = vrot.slane %v37, %v182
  %v184 = vmul.f32 %v177, %v183
  %v185 = vmul.f32 %v178, %v183
  %v186 = vmul.f32 %v179, %v183
  %v187 = vlaneseq
  %v188 = vshrl.u32 %v187, 7
  %v189 = vsub.s32 2, %v188
  %v190 = vrot.slane %v37, %v189
  %v191 = vadd.f32 %v184, %v190
  %v192 = vadd.f32 %v185, %v190
  %v193 = vadd.f32 %v186, %v190
  %v194 = vld [vmem:[%s1] sm:$0xff]
  %v195 = vld [vmem:[%s1 + $0x8] sm:$0xff]
  %v196 = vld [vmem:[%s1 + $0x10] sm:$0x3f]
  %v197 = vlaneseq
  %v198 = vand.u32 %v197, 127
  %199 = vset.pattern.permute.xlu0 0
  %200 = vperm.xlu0 %199, %v194
  %v201 = vpop.permute.xlu0 %200
  %202 = vset.pattern.permute.xlu0 0
  %203 = vperm.xlu0 %202, %v195
  %v204 = vpop.permute.xlu0 %203
  %205 = vset.pattern.permute.xlu0 0
  %206 = vperm.xlu0 %205, %v196
  %v207 = vpop.permute.xlu0 %206
  %vm208 = vcmp.eq.s32.totalorder %v198, %v201
  %vm209 = vcmp.eq.s32.totalorder %v198, %v204
  %vm210 = vcmp.eq.s32.totalorder %v198, %v207
  %v211 = vadd.s32 %v194, 60
  %v212 = vadd.s32 %v195, 60
  %v213 = vadd.s32 %v196, 60
  %214 = vset.pattern.permute.xlu0 1
  %215 = vperm.xlu0 %214, %v211
  %v216 = vpop.permute.xlu0 %215
  %217 = vset.pattern.permute.xlu0 1
  %218 = vperm.xlu0 %217, %v212
  %v219 = vpop.permute.xlu0 %218
  %220 = vset.pattern.permute.xlu0 1
  %221 = vperm.xlu0 %220, %v213
  %v222 = vpop.permute.xlu0 %221
  %vm223 = vcmp.eq.s32.totalorder %v198, %v216
  %vm224 = vcmp.eq.s32.totalorder %v198, %v219
  %vm225 = vcmp.eq.s32.totalorder %v198, %v222
  %vm226 = vmor %vm208, %vm223
  %vm227 = vmor %vm209, %vm224
  %vm228 = vmor %vm210, %vm225
  %v229 = vsel %vm226, 1, 0
  %v230 = vsel %vm227, 1, 0
  %v231 = vsel %vm228, 1, 0
  %v232 = vcvt.s32.f32 %v229
  %v233 = vcvt.s32.f32 %v230
  %v234 = vcvt.s32.f32 %v231
  %vm235 = vcmask 687104
  %v237 = vsel %vm235, %v232, 0
  %v240 = vsel %vm235, %v233, 0
  %v243 = vsel %vm235, %v234, 0
  %vm245 = vcmask 1043456
  %v247 = vsel %vm245, %v32, 0
  %249 = vmatprep.subr.mxu0 0.0
  %250 = vmatpush1.msra.mxu0 %v22
  %251 = vmatprep.subr.mxu0 0.0
  %252 = vmatpush1.msra.mxu0 %v23
  %253 = vmatprep.subr.mxu0 0.0
  %254 = vmatpush1.msra.mxu0 %v24
  %255 = vmatprep.subr.mxu0 0.0
  %256 = vmatpush1.msra.mxu0 %v25
  %257 = vmatprep.subr.mxu0 0.0
  %258 = vmatpush1.msra.mxu0 %v26
  %259 = vmatprep.subr.mxu0 0.0
  %260 = vmatpush1.msra.mxu0 %v27
  %261 = vmatprep.subr.mxu0 0.0
  %262 = vmatpush1.msra.mxu0 %v28
  %263 = vmatprep.subr.mxu0 0.0
  %264 = vmatpush1.msra.mxu0 %v29
  %265 = vmatprep.subr.mxu0 0.0
  %266 = vmatpush1.msra.mxu0 %v30
  %267 = vmatprep.subr.mxu0 0.0
  %268 = vmatpush1.msra.mxu0 %v31
  %269 = vmatprep.subr.mxu0 0.0
  %270 = vmatpush1.msra.mxu0 %v247
  %271 = vmatprep.subr.mxu0 0.0
  %272 = vmatpush1.msra.mxu0 0.0
  %273 = vmatprep.subr.mxu0 0.0
  %274 = vmatpush1.msra.mxu0 0.0
  %275 = vmatprep.subr.mxu0 0.0
  %276 = vmatpush1.msra.mxu0 0.0
  %277 = vmatprep.subr.mxu0 0.0
  %278 = vmatpush1.msra.mxu0 0.0
  %279 = vmatprep.subr.mxu0 0.0
  %280 = vmatpush1.msra.mxu0 0.0
  %281 = vmatprep.subr.mxu0 0.0
  %282 = vmatpush1.msra.mxu0 0.0
  %283 = vmatprep.subr.mxu0 0.0
  %284 = vmatpush1.msra.mxu0 0.0
  %285 = vmatprep.subr.mxu0 0.0
  %286 = vmatpush1.msra.mxu0 0.0
  %287 = vmatprep.subr.mxu0 0.0
  %288 = vmatpush1.msra.mxu0 0.0
  %289 = vmatprep.subr.mxu0 0.0
  %290 = vmatpush1.msra.mxu0 0.0
  %291 = vmatprep.subr.mxu0 0.0
  %292 = vmatpush1.msra.mxu0 0.0
  %293 = vmatprep.subr.mxu0 0.0
  %294 = vmatpush1.msra.mxu0 0.0
  %295 = vmatprep.subr.mxu0 0.0
  %296 = vmatpush1.msra.mxu0 0.0
  %297 = vmatprep.subr.mxu0 0.0
  %298 = vmatpush1.msra.mxu0 0.0
  %299 = vmatprep.subr.mxu0 0.0
  %300 = vmatpush1.msra.mxu0 0.0
  %301 = vmatprep.subr.mxu0 0.0
  %302 = vmatpush1.msra.mxu0 0.0
  %303 = vmatprep.subr.mxu0 0.0
  %304 = vmatpush1.msra.mxu0 0.0
  %305 = vmatprep.subr.mxu0 0.0
  %306 = vmatpush1.msra.mxu0 0.0
  %307 = vmatprep.subr.mxu0 0.0
  %308 = vmatpush1.msra.mxu0 0.0
  %309 = vmatprep.subr.mxu0 0.0
  %310 = vmatpush1.msra.mxu0 0.0
  %311 = vmatprep.subr.mxu0 0.0
  %312 = vmatpush1.msra.mxu0 0.0
  %313 = vmatprep.mubr.f32.mxu0 0.0
  %314 = vmatmul.mubr.f32.gmra.mrb[0].mxu0 %v237
  %v315 = vpop.f32.mrb[0].mxu0
  %v316 = vadd.f32 0.0, %v315
  %v317 = vpop.f32.mrb[0].mxu0
  %318 = vmatprep.mubr.f32.mxu0 0.0
  %319 = vmatmul.mubr.f32.gmra.mrb[0].mxu0 %v240
  %v320 = vpop.f32.mrb[0].mxu0
  %v321 = vadd.f32 0.0, %v320
  %v322 = vpop.f32.mrb[0].mxu0
  %323 = vmatprep.mubr.f32.mxu0 0.0
  %324 = vmatmul.mubr.f32.gmra.mrb[0].mxu0 %v243
  %v325 = vpop.f32.mrb[0].mxu0
  %v326 = vadd.f32 0.0, %v325
  %v327 = vpop.f32.mrb[0].mxu0
  %328 = vdwg.mxu0
  %v329 = vadd.f32 %v191, %v316
  %v330 = vadd.f32 %v192, %v321
  %v331 = vadd.f32 %v193, %v326
  %v332 = vadd.f32 %v329, %v38
  %v333 = vadd.f32 %v330, %v39
  %v334 = vadd.f32 %v331, %v40
  %v335 = vld [vmem:[%s0 + $0x18] sm:$0x3]
  %337 = vrot.lane.b32.xlu0 %v335, 1
  %v338 = vpop.permute.xlu0 %337
  %v340 = vsub.f32 %v335, %v338
  %v341 = vand.u32 2147483647, %v340
  %343 = vrot.lane.b32.xlu0 %v341, 127
  %v344 = vpop.permute.xlu0 %343
  %vm346 = vcmask 74752
  %v347 = vsel %vm346, %v344, 0.0
  %348 = vadd.xlane.f32.xlu0 %v347
  %v349 = vpop.xlane.xlu0 %348
  %v350 = vrcp.pop 11.0
  %v351 = vmul.f32 %v349, %v350
  %v352 = vsub.f32 %v341, %v351
  %v353 = vmul.f32 %v352, %v352
  %355 = vrot.lane.b32.xlu0 %v353, 127
  %v356 = vpop.permute.xlu0 %355
  %v358 = vsel %vm346, %v356, 0.0
  %359 = vadd.xlane.f32.xlu0 %v358
  %v360 = vpop.xlane.xlu0 %359
  %v361 = vmul.f32 %v351, %v351
  %v362 = vadd.f32 %v360, %v361
  %v363 = vrcp.pop 10.0
  %v364 = vmul.f32 %v362, %v363
  %v365 = vrsqrt.pop %v364
  %v366 = vmul.f32 %v364, %v365
  %vm367 = vcmp.eq.f32.partialorder %v364, inf
  %v368 = vsel %vm367, %v364, %v366
  %vm369 = vcmp.eq.f32.partialorder %v364, 0.0
  %v370 = vand.u32 %v364, 2147483648
  %v371 = vsel %vm369, %v370, %v368
  %v372 = vlaneseq
  %v373 = vshrl.u32 %v372, 7
  %v374 = vsub.s32 3, %v373
  %v375 = vrot.slane %v37, %v374
  %v376 = vmul.f32 %v371, %v375
  %v377 = vlaneseq
  %v378 = vshrl.u32 %v377, 7
  %v379 = vsub.s32 4, %v378
  %v380 = vrot.slane %v37, %v379
  %v381 = vadd.f32 %v376, %v380
  %vm382 = vcmask 254976
  %v383 = vsel %vm382, %v381, 0.0
  %384 = vadd.xlane.f32.xlu0 %v383
  %v385 = vpop.xlane.xlu0 %384
  %v386 = vmul.f32 %v385, %v149
  %v387 = vsub.f32 %v381, %v386
  %v388 = vmul.f32 %v387, %v387
  %v389 = vsel %vm382, %v388, 0.0
  %390 = vadd.xlane.f32.xlu0 %v389
  %v391 = vpop.xlane.xlu0 %390
  %v392 = vmul.f32 %v391, %v149
  %v393 = vadd.f32 %v392, 1e-05
  %v394 = vrsqrt.pop %v393
  %v395 = vmul.f32 %v387, %v394
  %v396 = vlaneseq
  %v397 = vshrl.u32 %v396, 7
  %v398 = vsub.s32 5, %v397
  %v399 = vrot.slane %v37, %v398
  %v400 = vmul.f32 %v395, %v399
  %v401 = vlaneseq
  %v402 = vshrl.u32 %v401, 7
  %v403 = vsub.s32 6, %v402
  %v404 = vrot.slane %v37, %v403
  %v405 = vadd.f32 %v400, %v404
  %v406 = vlaneseq
  %v407 = vshrl.u32 %v406, 7
  %v408 = vsub.s32 7, %v407
  %v409 = vrot.slane %v37, %v408
  %v411 = vsel %vm138, %v405, 0
  %413 = vmatprep.subr.mxu0 0.0
  %414 = vmatpush1.msra.mxu0 %v33
  %415 = vmatprep.subr.mxu0 0.0
  %416 = vmatpush1.msra.mxu0 %v34
  %417 = vmatprep.subr.mxu0 0.0
  %418 = vmatpush1.msra.mxu0 %v35
  %419 = vmatprep.subr.mxu0 0.0
  %420 = vmatpush1.msra.mxu0 %v36
  %421 = vmatprep.subr.mxu0 0.0
  %422 = vmatpush1.msra.mxu0 0.0
  %423 = vmatprep.subr.mxu0 0.0
  %424 = vmatpush1.msra.mxu0 0.0
  %425 = vmatprep.subr.mxu0 0.0
  %426 = vmatpush1.msra.mxu0 0.0
  %427 = vmatprep.subr.mxu0 0.0
  %428 = vmatpush1.msra.mxu0 0.0
  %429 = vmatprep.subr.mxu0 0.0
  %430 = vmatpush1.msra.mxu0 0.0
  %431 = vmatprep.subr.mxu0 0.0
  %432 = vmatpush1.msra.mxu0 0.0
  %433 = vmatprep.subr.mxu0 0.0
  %434 = vmatpush1.msra.mxu0 0.0
  %435 = vmatprep.subr.mxu0 0.0
  %436 = vmatpush1.msra.mxu0 0.0
  %437 = vmatprep.subr.mxu0 0.0
  %438 = vmatpush1.msra.mxu0 0.0
  %439 = vmatprep.subr.mxu0 0.0
  %440 = vmatpush1.msra.mxu0 0.0
  %441 = vmatprep.subr.mxu0 0.0
  %442 = vmatpush1.msra.mxu0 0.0
  %443 = vmatprep.subr.mxu0 0.0
  %444 = vmatpush1.msra.mxu0 0.0
  %445 = vmatprep.subr.mxu0 0.0
  %446 = vmatpush1.msra.mxu0 0.0
  %447 = vmatprep.subr.mxu0 0.0
  %448 = vmatpush1.msra.mxu0 0.0
  %449 = vmatprep.subr.mxu0 0.0
  %450 = vmatpush1.msra.mxu0 0.0
  %451 = vmatprep.subr.mxu0 0.0
  %452 = vmatpush1.msra.mxu0 0.0
  %453 = vmatprep.subr.mxu0 0.0
  %454 = vmatpush1.msra.mxu0 0.0
  %455 = vmatprep.subr.mxu0 0.0
  %456 = vmatpush1.msra.mxu0 0.0
  %457 = vmatprep.subr.mxu0 0.0
  %458 = vmatpush1.msra.mxu0 0.0
  %459 = vmatprep.subr.mxu0 0.0
  %460 = vmatpush1.msra.mxu0 0.0
  %461 = vmatprep.subr.mxu0 0.0
  %462 = vmatpush1.msra.mxu0 0.0
  %463 = vmatprep.subr.mxu0 0.0
  %464 = vmatpush1.msra.mxu0 0.0
  %465 = vmatprep.subr.mxu0 0.0
  %466 = vmatpush1.msra.mxu0 0.0
  %467 = vmatprep.subr.mxu0 0.0
  %468 = vmatpush1.msra.mxu0 0.0
  %469 = vmatprep.subr.mxu0 0.0
  %470 = vmatpush1.msra.mxu0 0.0
  %471 = vmatprep.subr.mxu0 0.0
  %472 = vmatpush1.msra.mxu0 0.0
  %473 = vmatprep.subr.mxu0 0.0
  %474 = vmatpush1.msra.mxu0 0.0
  %475 = vmatprep.subr.mxu0 0.0
  %476 = vmatpush1.msra.mxu0 0.0
  %477 = vmatprep.mubr.f32.mxu0 0.0
  %478 = vmatmul.mubr.f32.gmra.mrb[0].mxu0 %v411
  %v479 = vpop.f32.mrb[0].mxu0
  %v480 = vadd.f32 %v409, %v479
  %v481 = vpop.f32.mrb[0].mxu0
  %482 = vdwg.mxu0
  %v483 = vxor.u32 %v480, 2147483648
  %v484 = vmul.f32 %v483, 1.442695
  %v485 = vpow.pop %v484
  %v486 = vadd.f32 %v485, 1.0
  %v487 = vrcp.pop %v486
  %v488 = vmul.f32 1.0, %v487
  %v490 = vrot.slane %v488, 1
  %v492 = vlaneseq
  %v493 = vshrl.u32 %v492, 7
  %v494 = vsub.s32 0, %v493
  %v495 = vrot.slane %v488, %v494
  %v496 = vlaneseq
  %v497 = vshrl.u32 %v496, 7
  %v498 = vsub.s32 0, %v497
  %v499 = vrot.slane %v490, %v498
  %v500 = vmul.f32 %v332, %v495
  %v501 = vmul.f32 %v333, %v495
  %v502 = vmul.f32 %v334, %v495
  %v503 = vmul.f32 %v332, %v499
  %v504 = vmul.f32 %v333, %v499
  %v505 = vmul.f32 %v334, %v499
  %v506 = vrot.slane %v405, 1
  %v508 = vlaneseq
  %v509 = vshrl.u32 %v508, 7
  %v510 = vsub.s32 0, %v509
  %v511 = vrot.slane %v405, %v510
  %v512 = vlaneseq
  %v513 = vshrl.u32 %v512, 7
  %v514 = vsub.s32 0, %v513
  %v515 = vrot.slane %v506, %v514
  %v516 = vadd.f32 %v500, %v511
  %v517 = vadd.f32 %v501, %v511
  %v518 = vadd.f32 %v502, %v511
  %v519 = vadd.f32 %v503, %v515
  %v520 = vadd.f32 %v504, %v515
  %v521 = vadd.f32 %v505, %v515
  %522 = vst.msk [vmem:[%s3] sm:$0xff] %vm138, %v516
  %523 = vst.msk [vmem:[%s3 + $0x8] sm:$0xff] %vm138, %v517
  %524 = vst.msk [vmem:[%s3 + $0x10] sm:$0x3f] %vm145, %v518
  %525 = vst.msk [vmem:[%s3 + $0x18] sm:$0xff] %vm138, %v519
  %526 = vst.msk [vmem:[%s3 + $0x20] sm:$0xff] %vm138, %v520
  %527 = vst.msk [vmem:[%s3 + $0x28] sm:$0x3f] %vm145, %v521
  // Predicated region
  $region14: #{crypto_data_embedding.1} parent=0 // pred_check
    _
  $region15: #{crypto_data_embedding.1} parent=0 // pred_check_branch
    %529 = sbr.rel (0) target = $region17
  $region16: #{crypto_data_embedding.1} parent=0 // pred_region
    _
  $region17: #{crypto_data_embedding.1} parent=0 // pred_fallthru
    _
  // Predicated region
  $region18: #{crypto_data_embedding.1} parent=0 // pred_check
    _
  $region19: #{crypto_data_embedding.1} parent=0 // pred_check_branch
    %531 = sbr.rel (0) target = $region21
  $region20: #{crypto_data_embedding.1} parent=0 // pred_region
    _
  $region21: #{crypto_data_embedding.1} parent=0 // pred_fallthru
    _

</llo_original>
